<compile_context>
chip_gen: v6e
topology: v6e:2x2x1
jax: 0.10.0
libtpu: 0.0.40
codegen_flags: <defaults>
</compile_context>

<pallas_src>
import numpy as np
from functools import partial

import jax
import jax.numpy as jnp
from jax import lax
from jax.experimental import pallas as pl
from jax.experimental.pallas import tpu as pltpu


def _make_resunit_kernel(H, W, C, Nb):
    HW = H * W
    NHW = Nb * HW
    # Tap offsets in (ky, kx) row-major order, matching the (O, ky, kx, I) -> (O, 9*I)
    # weight packing done in pack_resunit_params.
    OFFSETS = [(ky - 1, kx - 1) for ky in range(3) for kx in range(3)]

    def kernel(mask_ref, x_ref, w1_ref, b1_ref, w2_ref, b2_ref, o_ref, slab_ref):
        # x_ref: (Nb, C, HW) f32.  Concatenate images along lanes -> (C, Nb*HW);
        # lane-dim concat of 256-lane (multiple of 128) pieces is alignment-friendly.
        xw = jnp.concatenate([x_ref[b] for b in range(Nb)], axis=1)  # pre-ReLU, for residual

        # Hoist the 9 precomputed border masks (each (1, NHW) f32 0/1) out of both convs.
        masks = [mask_ref[t:t + 1, :] for t in range(9)]

        def conv3x3(z, w_ref, b_ref):
            # Build the (9C, NHW) bf16 im2col slab: one lane-roll (XLU slot, otherwise
            # idle) + one mask-multiply (f32 VPU) + one bf16 store per tap.  Rolls that
            # cross an image boundary (or wrap the slab) only land on masked columns.
            for t, (oy, ox) in enumerate(OFFSETS):
                d = oy * W + ox
                shifted = z if d == 0 else pltpu.roll(z, shift=(-d) % NHW, axis=1)
                slab_ref[t * C:(t + 1) * C, :] = (shifted * masks[t]).astype(jnp.bfloat16)
            # Single fused MXU matmul per conv: (C, 9C) x (9C, NHW), bf16 in, f32 acc.
            acc = jnp.dot(w_ref[...], slab_ref[...],
                          preferred_element_type=jnp.float32)
            return acc + b_ref[...]                       # (C, NHW) + (C, 1), f32

        z = jnp.maximum(xw, 0.0)
        z = conv3x3(z, w1_ref, b1_ref)
        z = jnp.maximum(z, 0.0)
        z = conv3x3(z, w2_ref, b2_ref)
        y = z + xw                                        # residual uses pre-ReLU x

        for b in range(Nb):                               # lane-aligned static slices
            o_ref[b] = y[:, b * HW:(b + 1) * HW].astype(o_ref.dtype)

    return kernel


def pack_resunit_params(w1_oihw, b1, w2_oihw, b2):
    """Pack PyTorch-layout Conv2d params ONCE (outside the per-call jit).

    OIHW -> (O, ky, kx, I) -> (O, 9*I) in bf16 (MXU operands, f32 accumulation
    in-kernel); biases -> (C, 1) f32.
    """
    C = w1_oihw.shape[0]
    assert w1_oihw.shape == (C, C, 3, 3) and w2_oihw.shape == (C, C, 3, 3)
    w1m = jnp.transpose(w1_oihw, (0, 2, 3, 1)).reshape(C, 9 * C).astype(jnp.bfloat16)
    w2m = jnp.transpose(w2_oihw, (0, 2, 3, 1)).reshape(C, 9 * C).astype(jnp.bfloat16)
    b1r = b1.reshape(C, 1).astype(jnp.float32)
    b2r = b2.reshape(C, 1).astype(jnp.float32)
    return (w1m, b1r, w2m, b2r)


def _border_masks(H, W, Nb):
    """Host-side (numpy) 0/1 masks, (9, Nb*HW): valid iff the 3x3 tap source lies inside
    the SAME image.  Baked in as a constant — no per-grid-step iota / div / mod."""
    HW = H * W
    p = np.arange(HW)
    py, px = p // W, p % W
    rows = []
    for ky in range(3):
        for kx in range(3):
            oy, ox = ky - 1, kx - 1
            rows.append((py + oy >= 0) & (py + oy < H) & (px + ox >= 0) & (px + ox < W))
    m = np.stack(rows, axis=0).astype(np.float32)          # (9, HW)
    return np.tile(m, (1, Nb))                             # (9, Nb*HW)


@partial(jax.jit, static_argnames=("images_per_step",))
def resunit_nobn_forward(x_nchw, packed_params, images_per_step=None):
    """Pallas forward. x_nchw: (N, C, H, W); packed_params from pack_resunit_params."""
    w1m, b1r, w2m, b2r = packed_params
    N, C, H, W = x_nchw.shape
    HW = H * W

    if images_per_step is None:
        # Default: keep >= 2 grid steps when N >= 2 so the "parallel" batch axis still
        # shards across v7x's two TensorCores, while each step batches ceil(N/2) images
        # into one wide matmul.  Single-TC v5e/v6e: pass images_per_step=N instead.
        images_per_step = max(1, -(-N // 2))
    Nb = max(1, min(int(images_per_step), N))
    num_steps = -(-N // Nb)
    Npad = num_steps * Nb

    # Channel-major activations = contiguous-NCHW flattened: free reshape, no transpose.
    x = x_nchw.reshape(N, C, HW).astype(jnp.float32)
    if Npad != N:
        x = jnp.concatenate([x, jnp.zeros((Npad - N, C, HW), jnp.float32)], axis=0)

    mask = jnp.asarray(_border_masks(H, W, Nb))            # (9, Nb*HW) constant

    kernel = _make_resunit_kernel(H, W, C, Nb)
    NHW = Nb * HW

    out = pl.pallas_call(
        kernel,
        out_shape=jax.ShapeDtypeStruct((Npad, C, HW), jnp.float32),
        grid_spec=pltpu.PrefetchScalarGridSpec(
            num_scalar_prefetch=0,
            grid=(num_steps,),
            in_specs=[
                pl.BlockSpec((9, NHW), lambda g: (0, 0)),         # border masks (const)
                pl.BlockSpec((Nb, C, HW), lambda g: (g, 0, 0)),   # Nb images / step
                pl.BlockSpec((C, 9 * C), lambda g: (0, 0)),       # packed conv1 weight
                pl.BlockSpec((C, 1), lambda g: (0, 0)),           # conv1 bias
                pl.BlockSpec((C, 9 * C), lambda g: (0, 0)),       # packed conv2 weight
                pl.BlockSpec((C, 1), lambda g: (0, 0)),           # conv2 bias
            ],
            out_specs=pl.BlockSpec((Nb, C, HW), lambda g: (g, 0, 0)),
            # bf16 im2col slab: half the VMEM / store traffic of the old f32 slab.
            scratch_shapes=[pltpu.VMEM((9 * C, NHW), jnp.bfloat16)],
        ),
        compiler_params=pltpu.CompilerParams(
            dimension_semantics=("parallel",),   # shards batch steps over v7x's 2 TCs
            # Tiny footprint here (~tens of KiB).  If C/H/W/Nb grow, re-derive against
            # v7x's 64 MiB (32 MiB default scoped) — don't reuse v5e/v6e sizing blindly.
            vmem_limit_bytes=32 * 1024 * 1024,
        ),
    )(mask, x, w1m, b1r, w2m, b2r)

    # Drop batch padding; free reshape back to NCHW (no transpose).
    return out[:N].reshape(N, C, H, W)


def resunit_nobn_reference(x, w1, b1, w2, b2):
    """Plain-JAX f32 reference matching torch.nn.functional semantics (NCHW/OIHW)."""
    dn = lax.conv_dimension_numbers(x.shape, w1.shape, ("NCHW", "OIHW", "NCHW"))
    z = jax.nn.relu(x)
    z = lax.conv_general_dilated(z, w1, (1, 1), ((1, 1), (1, 1)),
                                 dimension_numbers=dn) + b1[None, :, None, None]
    z = jax.nn.relu(z)
    z = lax.conv_general_dilated(z, w2, (1, 1), ((1, 1), (1, 1)),
                                 dimension_numbers=dn) + b2[None, :, None, None]
    return z + x


if __name__ == "__main__":
    # Small shapes consistent with the module: residual add requires in_ch == out_ch.
    N, C, H, W = 2, 4, 16, 16

    key = jax.random.PRNGKey(0)
    kx, kw1, kb1, kw2, kb2 = jax.random.split(key, 5)

    x = jax.random.normal(kx, (N, C, H, W), dtype=jnp.float32)
    fan_in = C * 3 * 3
    bound = 1.0 / jnp.sqrt(fan_in)
    w1 = jax.random.uniform(kw1, (C, C, 3, 3), jnp.float32, -bound, bound)
    b1 = jax.random.uniform(kb1, (C,), jnp.float32, -bound, bound)
    w2 = jax.random.uniform(kw2, (C, C, 3, 3), jnp.float32, -bound, bound)
    b2 = jax.random.uniform(kb2, (C,), jnp.float32, -bound, bound)

    # Pack weights ONCE, outside the per-call jit (review item: pre-pack params).
    params = pack_resunit_params(w1, b1, w2, b2)
    params = jax.tree_util.tree_map(jax.block_until_ready, params)

    ref = jax.block_until_ready(resunit_nobn_reference(x, w1, b1, w2, b2))

    # (a) whole batch in one grid step -> one (C,9C)x(9C,N*HW) matmul per conv
    #     (best on single-TC v5e/v6e).
    out_a = jax.block_until_ready(resunit_nobn_forward(x, params, images_per_step=N))
    # (b) default heuristic: >=2 grid steps (keeps both v7x TensorCores busy).
    out_b = jax.block_until_ready(resunit_nobn_forward(x, params))

    for out in (out_a, out_b):
        assert out.shape == (N, C, H, W)
        # bf16 MXU operands with f32 accumulation -> looser tolerance vs f32 reference.
        assert jnp.allclose(out, ref, atol=5e-2, rtol=5e-2), (
            float(jnp.max(jnp.abs(out - ref))))

    print("KERNEL_OK")
</pallas_src>

<mosaic_0001>
module attributes {stable_mosaic.version = 11 : i64} {
  func.func @kernel(%arg0: i32, %arg1: memref<9x512xf32, #tpu.memory_space<vmem>>, %arg2: memref<2x4x256xf32, #tpu.memory_space<vmem>>, %arg3: memref<4x36xbf16, #tpu.memory_space<vmem>>, %arg4: memref<4x1xf32, #tpu.memory_space<vmem>>, %arg5: memref<4x36xbf16, #tpu.memory_space<vmem>>, %arg6: memref<4x1xf32, #tpu.memory_space<vmem>>, %arg7: memref<2x4x256xf32, #tpu.memory_space<vmem>>, %arg8: memref<36x512xbf16, #tpu.memory_space<vmem>>) attributes {dimension_semantics = [#tpu.dimension_semantics<parallel>], iteration_bounds = array<i64: 1>, scalar_prefetch = 0 : i64, scratch_operands = 1 : i64, tpu.core_type = #tpu.core_type<tc>, window_params = [{pipeline_mode = #tpu.pipeline_mode<synchronous>, transform_indices = @transform_0, window_bounds = array<i64: 9, 512>}, {transform_indices = @transform_1, window_bounds = array<i64: 2, 4, 256>}, {pipeline_mode = #tpu.pipeline_mode<synchronous>, transform_indices = @transform_2, window_bounds = array<i64: 4, 36>}, {pipeline_mode = #tpu.pipeline_mode<synchronous>, transform_indices = @transform_3, window_bounds = array<i64: 4, 1>}, {pipeline_mode = #tpu.pipeline_mode<synchronous>, transform_indices = @transform_4, window_bounds = array<i64: 4, 36>}, {pipeline_mode = #tpu.pipeline_mode<synchronous>, transform_indices = @transform_5, window_bounds = array<i64: 4, 1>}, {transform_indices = @transform_6, window_bounds = array<i64: 2, 4, 256>}]} {
    %c0 = arith.constant 0 : index
    %c0_0 = arith.constant 0 : index
    %c0_1 = arith.constant 0 : index
    %0 = vector.load %arg2[%c0, %c0_0, %c0_1] : memref<2x4x256xf32, #tpu.memory_space<vmem>>, vector<1x4x256xf32>
    %1 = vector.shape_cast %0 : vector<1x4x256xf32> to vector<4x256xf32>
    %c1 = arith.constant 1 : index
    %c0_2 = arith.constant 0 : index
    %c0_3 = arith.constant 0 : index
    %2 = vector.load %arg2[%c1, %c0_2, %c0_3] : memref<2x4x256xf32, #tpu.memory_space<vmem>>, vector<1x4x256xf32>
    %3 = vector.shape_cast %2 : vector<1x4x256xf32> to vector<4x256xf32>
    %4 = tpu.concatenate %1, %3 in 1 : vector<4x256xf32>, vector<4x256xf32> -> vector<4x512xf32>
    %c0_4 = arith.constant 0 : index
    %c0_5 = arith.constant 0 : index
    %5 = vector.load %arg1[%c0_4, %c0_5] : memref<9x512xf32, #tpu.memory_space<vmem>>, vector<1x512xf32>
    %c1_6 = arith.constant 1 : index
    %c0_7 = arith.constant 0 : index
    %6 = vector.load %arg1[%c1_6, %c0_7] : memref<9x512xf32, #tpu.memory_space<vmem>>, vector<1x512xf32>
    %c2 = arith.constant 2 : index
    %c0_8 = arith.constant 0 : index
    %7 = vector.load %arg1[%c2, %c0_8] : memref<9x512xf32, #tpu.memory_space<vmem>>, vector<1x512xf32>
    %c3 = arith.constant 3 : index
    %c0_9 = arith.constant 0 : index
    %8 = vector.load %arg1[%c3, %c0_9] : memref<9x512xf32, #tpu.memory_space<vmem>>, vector<1x512xf32>
    %c4 = arith.constant 4 : index
    %c0_10 = arith.constant 0 : index
    %9 = vector.load %arg1[%c4, %c0_10] : memref<9x512xf32, #tpu.memory_space<vmem>>, vector<1x512xf32>
    %c5 = arith.constant 5 : index
    %c0_11 = arith.constant 0 : index
    %10 = vector.load %arg1[%c5, %c0_11] : memref<9x512xf32, #tpu.memory_space<vmem>>, vector<1x512xf32>
    %c6 = arith.constant 6 : index
    %c0_12 = arith.constant 0 : index
    %11 = vector.load %arg1[%c6, %c0_12] : memref<9x512xf32, #tpu.memory_space<vmem>>, vector<1x512xf32>
    %c7 = arith.constant 7 : index
    %c0_13 = arith.constant 0 : index
    %12 = vector.load %arg1[%c7, %c0_13] : memref<9x512xf32, #tpu.memory_space<vmem>>, vector<1x512xf32>
    %c8 = arith.constant 8 : index
    %c0_14 = arith.constant 0 : index
    %13 = vector.load %arg1[%c8, %c0_14] : memref<9x512xf32, #tpu.memory_space<vmem>>, vector<1x512xf32>
    %cst = arith.constant 0.000000e+00 : f32
    %14 = vector.broadcast %cst : f32 to vector<4x512xf32>
    %15 = arith.maximumf %4, %14 : vector<4x512xf32>
    %c17_i32 = arith.constant 17 : i32
    %16 = tpu.dynamic_rotate %15 by %c17_i32 dim 1 : vector<4x512xf32>, i32 -> vector<4x512xf32>
    %17 = vector.broadcast %5 : vector<1x512xf32> to vector<4x512xf32>
    %18 = arith.mulf %16, %17 : vector<4x512xf32>
    %19 = arith.truncf %18 : vector<4x512xf32> to vector<4x512xbf16>
    %c0_15 = arith.constant 0 : index
    %c0_16 = arith.constant 0 : index
    %20 = vector.load %arg8[%c0_15, %c0_16] : memref<36x512xbf16, #tpu.memory_space<vmem>>, vector<4x512xbf16>
    tpu.vector_store %arg8[%c0_15, %c0_16], %19 {strides = array<i32>} : memref<36x512xbf16, #tpu.memory_space<vmem>>, vector<4x512xbf16>,
    %c16_i32 = arith.constant 16 : i32
    %21 = tpu.dynamic_rotate %15 by %c16_i32 dim 1 : vector<4x512xf32>, i32 -> vector<4x512xf32>
    %22 = vector.broadcast %6 : vector<1x512xf32> to vector<4x512xf32>
    %23 = arith.mulf %21, %22 : vector<4x512xf32>
    %24 = arith.truncf %23 : vector<4x512xf32> to vector<4x512xbf16>
    %c4_17 = arith.constant 4 : index
    %c0_18 = arith.constant 0 : index
    %25 = vector.load %arg8[%c4_17, %c0_18] : memref<36x512xbf16, #tpu.memory_space<vmem>>, vector<4x512xbf16>
    tpu.vector_store %arg8[%c4_17, %c0_18], %24 {strides = array<i32>} : memref<36x512xbf16, #tpu.memory_space<vmem>>, vector<4x512xbf16>,
    %c15_i32 = arith.constant 15 : i32
    %26 = tpu.dynamic_rotate %15 by %c15_i32 dim 1 : vector<4x512xf32>, i32 -> vector<4x512xf32>
    %27 = vector.broadcast %7 : vector<1x512xf32> to vector<4x512xf32>
    %28 = arith.mulf %26, %27 : vector<4x512xf32>
    %29 = arith.truncf %28 : vector<4x512xf32> to vector<4x512xbf16>
    %c8_19 = arith.constant 8 : index
    %c0_20 = arith.constant 0 : index
    %30 = vector.load %arg8[%c8_19, %c0_20] : memref<36x512xbf16, #tpu.memory_space<vmem>>, vector<4x512xbf16>
    tpu.vector_store %arg8[%c8_19, %c0_20], %29 {strides = array<i32>} : memref<36x512xbf16, #tpu.memory_space<vmem>>, vector<4x512xbf16>,
    %c1_i32 = arith.constant 1 : i32
    %31 = tpu.dynamic_rotate %15 by %c1_i32 dim 1 : vector<4x512xf32>, i32 -> vector<4x512xf32>
    %32 = vector.broadcast %8 : vector<1x512xf32> to vector<4x512xf32>
    %33 = arith.mulf %31, %32 : vector<4x512xf32>
    %34 = arith.truncf %33 : vector<4x512xf32> to vector<4x512xbf16>
    %c12 = arith.constant 12 : index
    %c0_21 = arith.constant 0 : index
    %35 = vector.load %arg8[%c12, %c0_21] : memref<36x512xbf16, #tpu.memory_space<vmem>>, vector<4x512xbf16>
    tpu.vector_store %arg8[%c12, %c0_21], %34 {strides = array<i32>} : memref<36x512xbf16, #tpu.memory_space<vmem>>, vector<4x512xbf16>,
    %36 = vector.broadcast %9 : vector<1x512xf32> to vector<4x512xf32>
    %37 = arith.mulf %15, %36 : vector<4x512xf32>
    %38 = arith.truncf %37 : vector<4x512xf32> to vector<4x512xbf16>
    %c16 = arith.constant 16 : index
    %c0_22 = arith.constant 0 : index
    %39 = vector.load %arg8[%c16, %c0_22] : memref<36x512xbf16, #tpu.memory_space<vmem>>, vector<4x512xbf16>
    tpu.vector_store %arg8[%c16, %c0_22], %38 {strides = array<i32>} : memref<36x512xbf16, #tpu.memory_space<vmem>>, vector<4x512xbf16>,
    %c511_i32 = arith.constant 511 : i32
    %40 = tpu.dynamic_rotate %15 by %c511_i32 dim 1 : vector<4x512xf32>, i32 -> vector<4x512xf32>
    %41 = vector.broadcast %10 : vector<1x512xf32> to vector<4x512xf32>
    %42 = arith.mulf %40, %41 : vector<4x512xf32>
    %43 = arith.truncf %42 : vector<4x512xf32> to vector<4x512xbf16>
    %c20 = arith.constant 20 : index
    %c0_23 = arith.constant 0 : index
    %44 = vector.load %arg8[%c20, %c0_23] : memref<36x512xbf16, #tpu.memory_space<vmem>>, vector<4x512xbf16>
    tpu.vector_store %arg8[%c20, %c0_23], %43 {strides = array<i32>} : memref<36x512xbf16, #tpu.memory_space<vmem>>, vector<4x512xbf16>,
    %c497_i32 = arith.constant 497 : i32
    %45 = tpu.dynamic_rotate %15 by %c497_i32 dim 1 : vector<4x512xf32>, i32 -> vector<4x512xf32>
    %46 = vector.broadcast %11 : vector<1x512xf32> to vector<4x512xf32>
    %47 = arith.mulf %45, %46 : vector<4x512xf32>
    %48 = arith.truncf %47 : vector<4x512xf32> to vector<4x512xbf16>
    %c24 = arith.constant 24 : index
    %c0_24 = arith.constant 0 : index
    %49 = vector.load %arg8[%c24, %c0_24] : memref<36x512xbf16, #tpu.memory_space<vmem>>, vector<4x512xbf16>
    tpu.vector_store %arg8[%c24, %c0_24], %48 {strides = array<i32>} : memref<36x512xbf16, #tpu.memory_space<vmem>>, vector<4x512xbf16>,
    %c496_i32 = arith.constant 496 : i32
    %50 = tpu.dynamic_rotate %15 by %c496_i32 dim 1 : vector<4x512xf32>, i32 -> vector<4x512xf32>
    %51 = vector.broadcast %12 : vector<1x512xf32> to vector<4x512xf32>
    %52 = arith.mulf %50, %51 : vector<4x512xf32>
    %53 = arith.truncf %52 : vector<4x512xf32> to vector<4x512xbf16>
    %c28 = arith.constant 28 : index
    %c0_25 = arith.constant 0 : index
    %54 = vector.load %arg8[%c28, %c0_25] : memref<36x512xbf16, #tpu.memory_space<vmem>>, vector<4x512xbf16>
    tpu.vector_store %arg8[%c28, %c0_25], %53 {strides = array<i32>} : memref<36x512xbf16, #tpu.memory_space<vmem>>, vector<4x512xbf16>,
    %c495_i32 = arith.constant 495 : i32
    %55 = tpu.dynamic_rotate %15 by %c495_i32 dim 1 : vector<4x512xf32>, i32 -> vector<4x512xf32>
    %56 = vector.broadcast %13 : vector<1x512xf32> to vector<4x512xf32>
    %57 = arith.mulf %55, %56 : vector<4x512xf32>
    %58 = arith.truncf %57 : vector<4x512xf32> to vector<4x512xbf16>
    %c32 = arith.constant 32 : index
    %c0_26 = arith.constant 0 : index
    %59 = vector.load %arg8[%c32, %c0_26] : memref<36x512xbf16, #tpu.memory_space<vmem>>, vector<4x512xbf16>
    tpu.vector_store %arg8[%c32, %c0_26], %58 {strides = array<i32>} : memref<36x512xbf16, #tpu.memory_space<vmem>>, vector<4x512xbf16>,
    %c0_27 = arith.constant 0 : index
    %c0_28 = arith.constant 0 : index
    %60 = vector.load %arg3[%c0_27, %c0_28] : memref<4x36xbf16, #tpu.memory_space<vmem>>, vector<4x36xbf16>
    %c0_29 = arith.constant 0 : index
    %c0_30 = arith.constant 0 : index
    %61 = vector.load %arg8[%c0_29, %c0_30] : memref<36x512xbf16, #tpu.memory_space<vmem>>, vector<36x512xbf16>
    %cst_31 = arith.constant dense<0.000000e+00> : vector<4x512xf32>
    %62 = tpu.matmul %60, %61, %cst_31 {dimension_numbers = #tpu.dot_dimension_numbers<[1], [0], [0], [1], [0, 0, 1, 1], [], []>} : vector<4x36xbf16>, vector<36x512xbf16>, vector<4x512xf32> -> vector<4x512xf32>
    %c0_32 = arith.constant 0 : index
    %c0_33 = arith.constant 0 : index
    %63 = vector.load %arg4[%c0_32, %c0_33] : memref<4x1xf32, #tpu.memory_space<vmem>>, vector<4x1xf32>
    %64 = vector.broadcast %63 : vector<4x1xf32> to vector<4x512xf32>
    %65 = arith.addf %62, %64 : vector<4x512xf32>
    %cst_34 = arith.constant 0.000000e+00 : f32
    %66 = vector.broadcast %cst_34 : f32 to vector<4x512xf32>
    %67 = arith.maximumf %65, %66 : vector<4x512xf32>
    %c17_i32_35 = arith.constant 17 : i32
    %68 = tpu.dynamic_rotate %67 by %c17_i32_35 dim 1 : vector<4x512xf32>, i32 -> vector<4x512xf32>
    %69 = vector.broadcast %5 : vector<1x512xf32> to vector<4x512xf32>
    %70 = arith.mulf %68, %69 : vector<4x512xf32>
    %71 = arith.truncf %70 : vector<4x512xf32> to vector<4x512xbf16>
    %c0_36 = arith.constant 0 : index
    %c0_37 = arith.constant 0 : index
    %72 = vector.load %arg8[%c0_36, %c0_37] : memref<36x512xbf16, #tpu.memory_space<vmem>>, vector<4x512xbf16>
    tpu.vector_store %arg8[%c0_36, %c0_37], %71 {strides = array<i32>} : memref<36x512xbf16, #tpu.memory_space<vmem>>, vector<4x512xbf16>,
    %c16_i32_38 = arith.constant 16 : i32
    %73 = tpu.dynamic_rotate %67 by %c16_i32_38 dim 1 : vector<4x512xf32>, i32 -> vector<4x512xf32>
    %74 = vector.broadcast %6 : vector<1x512xf32> to vector<4x512xf32>
    %75 = arith.mulf %73, %74 : vector<4x512xf32>
    %76 = arith.truncf %75 : vector<4x512xf32> to vector<4x512xbf16>
    %c4_39 = arith.constant 4 : index
    %c0_40 = arith.constant 0 : index
    %77 = vector.load %arg8[%c4_39, %c0_40] : memref<36x512xbf16, #tpu.memory_space<vmem>>, vector<4x512xbf16>
    tpu.vector_store %arg8[%c4_39, %c0_40], %76 {strides = array<i32>} : memref<36x512xbf16, #tpu.memory_space<vmem>>, vector<4x512xbf16>,
    %c15_i32_41 = arith.constant 15 : i32
    %78 = tpu.dynamic_rotate %67 by %c15_i32_41 dim 1 : vector<4x512xf32>, i32 -> vector<4x512xf32>
    %79 = vector.broadcast %7 : vector<1x512xf32> to vector<4x512xf32>
    %80 = arith.mulf %78, %79 : vector<4x512xf32>
    %81 = arith.truncf %80 : vector<4x512xf32> to vector<4x512xbf16>
    %c8_42 = arith.constant 8 : index
    %c0_43 = arith.constant 0 : index
    %82 = vector.load %arg8[%c8_42, %c0_43] : memref<36x512xbf16, #tpu.memory_space<vmem>>, vector<4x512xbf16>
    tpu.vector_store %arg8[%c8_42, %c0_43], %81 {strides = array<i32>} : memref<36x512xbf16, #tpu.memory_space<vmem>>, vector<4x512xbf16>,
    %c1_i32_44 = arith.constant 1 : i32
    %83 = tpu.dynamic_rotate %67 by %c1_i32_44 dim 1 : vector<4x512xf32>, i32 -> vector<4x512xf32>
    %84 = vector.broadcast %8 : vector<1x512xf32> to vector<4x512xf32>
    %85 = arith.mulf %83, %84 : vector<4x512xf32>
    %86 = arith.truncf %85 : vector<4x512xf32> to vector<4x512xbf16>
    %c12_45 = arith.constant 12 : index
    %c0_46 = arith.constant 0 : index
    %87 = vector.load %arg8[%c12_45, %c0_46] : memref<36x512xbf16, #tpu.memory_space<vmem>>, vector<4x512xbf16>
    tpu.vector_store %arg8[%c12_45, %c0_46], %86 {strides = array<i32>} : memref<36x512xbf16, #tpu.memory_space<vmem>>, vector<4x512xbf16>,
    %88 = vector.broadcast %9 : vector<1x512xf32> to vector<4x512xf32>
    %89 = arith.mulf %67, %88 : vector<4x512xf32>
    %90 = arith.truncf %89 : vector<4x512xf32> to vector<4x512xbf16>
    %c16_47 = arith.constant 16 : index
    %c0_48 = arith.constant 0 : index
    %91 = vector.load %arg8[%c16_47, %c0_48] : memref<36x512xbf16, #tpu.memory_space<vmem>>, vector<4x512xbf16>
    tpu.vector_store %arg8[%c16_47, %c0_48], %90 {strides = array<i32>} : memref<36x512xbf16, #tpu.memory_space<vmem>>, vector<4x512xbf16>,
    %c511_i32_49 = arith.constant 511 : i32
    %92 = tpu.dynamic_rotate %67 by %c511_i32_49 dim 1 : vector<4x512xf32>, i32 -> vector<4x512xf32>
    %93 = vector.broadcast %10 : vector<1x512xf32> to vector<4x512xf32>
    %94 = arith.mulf %92, %93 : vector<4x512xf32>
    %95 = arith.truncf %94 : vector<4x512xf32> to vector<4x512xbf16>
    %c20_50 = arith.constant 20 : index
    %c0_51 = arith.constant 0 : index
    %96 = vector.load %arg8[%c20_50, %c0_51] : memref<36x512xbf16, #tpu.memory_space<vmem>>, vector<4x512xbf16>
    tpu.vector_store %arg8[%c20_50, %c0_51], %95 {strides = array<i32>} : memref<36x512xbf16, #tpu.memory_space<vmem>>, vector<4x512xbf16>,
    %c497_i32_52 = arith.constant 497 : i32
    %97 = tpu.dynamic_rotate %67 by %c497_i32_52 dim 1 : vector<4x512xf32>, i32 -> vector<4x512xf32>
    %98 = vector.broadcast %11 : vector<1x512xf32> to vector<4x512xf32>
    %99 = arith.mulf %97, %98 : vector<4x512xf32>
    %100 = arith.truncf %99 : vector<4x512xf32> to vector<4x512xbf16>
    %c24_53 = arith.constant 24 : index
    %c0_54 = arith.constant 0 : index
    %101 = vector.load %arg8[%c24_53, %c0_54] : memref<36x512xbf16, #tpu.memory_space<vmem>>, vector<4x512xbf16>
    tpu.vector_store %arg8[%c24_53, %c0_54], %100 {strides = array<i32>} : memref<36x512xbf16, #tpu.memory_space<vmem>>, vector<4x512xbf16>,
    %c496_i32_55 = arith.constant 496 : i32
    %102 = tpu.dynamic_rotate %67 by %c496_i32_55 dim 1 : vector<4x512xf32>, i32 -> vector<4x512xf32>
    %103 = vector.broadcast %12 : vector<1x512xf32> to vector<4x512xf32>
    %104 = arith.mulf %102, %103 : vector<4x512xf32>
    %105 = arith.truncf %104 : vector<4x512xf32> to vector<4x512xbf16>
    %c28_56 = arith.constant 28 : index
    %c0_57 = arith.constant 0 : index
    %106 = vector.load %arg8[%c28_56, %c0_57] : memref<36x512xbf16, #tpu.memory_space<vmem>>, vector<4x512xbf16>
    tpu.vector_store %arg8[%c28_56, %c0_57], %105 {strides = array<i32>} : memref<36x512xbf16, #tpu.memory_space<vmem>>, vector<4x512xbf16>,
    %c495_i32_58 = arith.constant 495 : i32
    %107 = tpu.dynamic_rotate %67 by %c495_i32_58 dim 1 : vector<4x512xf32>, i32 -> vector<4x512xf32>
    %108 = vector.broadcast %13 : vector<1x512xf32> to vector<4x512xf32>
    %109 = arith.mulf %107, %108 : vector<4x512xf32>
    %110 = arith.truncf %109 : vector<4x512xf32> to vector<4x512xbf16>
    %c32_59 = arith.constant 32 : index
    %c0_60 = arith.constant 0 : index
    %111 = vector.load %arg8[%c32_59, %c0_60] : memref<36x512xbf16, #tpu.memory_space<vmem>>, vector<4x512xbf16>
    tpu.vector_store %arg8[%c32_59, %c0_60], %110 {strides = array<i32>} : memref<36x512xbf16, #tpu.memory_space<vmem>>, vector<4x512xbf16>,
    %c0_61 = arith.constant 0 : index
    %c0_62 = arith.constant 0 : index
    %112 = vector.load %arg5[%c0_61, %c0_62] : memref<4x36xbf16, #tpu.memory_space<vmem>>, vector<4x36xbf16>
    %c0_63 = arith.constant 0 : index
    %c0_64 = arith.constant 0 : index
    %113 = vector.load %arg8[%c0_63, %c0_64] : memref<36x512xbf16, #tpu.memory_space<vmem>>, vector<36x512xbf16>
    %cst_65 = arith.constant dense<0.000000e+00> : vector<4x512xf32>
    %114 = tpu.matmul %112, %113, %cst_65 {dimension_numbers = #tpu.dot_dimension_numbers<[1], [0], [0], [1], [0, 0, 1, 1], [], []>} : vector<4x36xbf16>, vector<36x512xbf16>, vector<4x512xf32> -> vector<4x512xf32>
    %c0_66 = arith.constant 0 : index
    %c0_67 = arith.constant 0 : index
    %115 = vector.load %arg6[%c0_66, %c0_67] : memref<4x1xf32, #tpu.memory_space<vmem>>, vector<4x1xf32>
    %116 = vector.broadcast %115 : vector<4x1xf32> to vector<4x512xf32>
    %117 = arith.addf %114, %116 : vector<4x512xf32>
    %118 = arith.addf %117, %4 : vector<4x512xf32>
    %119 = vector.extract_strided_slice %118 {offsets = [0, 0], sizes = [4, 256], strides = [1, 1]} : vector<4x512xf32> to vector<4x256xf32>
    %c0_68 = arith.constant 0 : index
    %c0_69 = arith.constant 0 : index
    %c0_70 = arith.constant 0 : index
    %120 = vector.load %arg7[%c0_68, %c0_69, %c0_70] : memref<2x4x256xf32, #tpu.memory_space<vmem>>, vector<1x4x256xf32>
    %121 = vector.shape_cast %120 : vector<1x4x256xf32> to vector<4x256xf32>
    %122 = vector.shape_cast %119 : vector<4x256xf32> to vector<1x4x256xf32>
    tpu.vector_store %arg7[%c0_68, %c0_69, %c0_70], %122 {strides = array<i32>} : memref<2x4x256xf32, #tpu.memory_space<vmem>>, vector<1x4x256xf32>,
    %123 = vector.extract_strided_slice %118 {offsets = [0, 256], sizes = [4, 256], strides = [1, 1]} : vector<4x512xf32> to vector<4x256xf32>
    %c1_71 = arith.constant 1 : index
    %c0_72 = arith.constant 0 : index
    %c0_73 = arith.constant 0 : index
    %124 = vector.load %arg7[%c1_71, %c0_72, %c0_73] : memref<2x4x256xf32, #tpu.memory_space<vmem>>, vector<1x4x256xf32>
    %125 = vector.shape_cast %124 : vector<1x4x256xf32> to vector<4x256xf32>
    %126 = vector.shape_cast %123 : vector<4x256xf32> to vector<1x4x256xf32>
    tpu.vector_store %arg7[%c1_71, %c0_72, %c0_73], %126 {strides = array<i32>} : memref<2x4x256xf32, #tpu.memory_space<vmem>>, vector<1x4x256xf32>,
    return
  }
  func.func @transform_0(%arg0: i32) -> (i32, i32) {
    %c0_i32 = arith.constant 0 : i32
    %c0_i32_0 = arith.constant 0 : i32
    %c0_i32_1 = arith.constant 0 : i32
    return %c0_i32, %c0_i32_0 : i32, i32
  }
  func.func @transform_1(%arg0: i32) -> (i32, i32, i32) {
    %c0_i32 = arith.constant 0 : i32
    %c0_i32_0 = arith.constant 0 : i32
    %c0_i32_1 = arith.constant 0 : i32
    return %arg0, %c0_i32, %c0_i32_0 : i32, i32, i32
  }
  func.func @transform_2(%arg0: i32) -> (i32, i32) {
    %c0_i32 = arith.constant 0 : i32
    %c0_i32_0 = arith.constant 0 : i32
    %c0_i32_1 = arith.constant 0 : i32
    return %c0_i32, %c0_i32_0 : i32, i32
  }
  func.func @transform_3(%arg0: i32) -> (i32, i32) {
    %c0_i32 = arith.constant 0 : i32
    %c0_i32_0 = arith.constant 0 : i32
    %c0_i32_1 = arith.constant 0 : i32
    return %c0_i32, %c0_i32_0 : i32, i32
  }
  func.func @transform_4(%arg0: i32) -> (i32, i32) {
    %c0_i32 = arith.constant 0 : i32
    %c0_i32_0 = arith.constant 0 : i32
    %c0_i32_1 = arith.constant 0 : i32
    return %c0_i32, %c0_i32_0 : i32, i32
  }
  func.func @transform_5(%arg0: i32) -> (i32, i32) {
    %c0_i32 = arith.constant 0 : i32
    %c0_i32_0 = arith.constant 0 : i32
    %c0_i32_1 = arith.constant 0 : i32
    return %c0_i32, %c0_i32_0 : i32, i32
  }
  func.func @transform_6(%arg0: i32) -> (i32, i32, i32) {
    %c0_i32 = arith.constant 0 : i32
    %c0_i32_0 = arith.constant 0 : i32
    %c0_i32_1 = arith.constant 0 : i32
    return %arg0, %c0_i32, %c0_i32_0 : i32, i32, i32
  }
}

</mosaic_0001>

<llo_original>
// kernel: resunit_nobn_forward.1
$region0: #{resunit_nobn_forward.1}
  #allocation0 [shape = 'u32[]', space=smem, size = 0x4, offset = 0x4, fixed_abs, tag = 'smem constant byte address 0x4 - core index']
  #allocation1 [shape = 'u32[144,128]{1,0:T(1,128)}', space=vmem, size = 0x12000, scoped, tag = 'internal scratch']
  #allocation2 [shape = 'bf16[36,512]{1,0:T(8,128)(2,1)}', space=vmem, size = 0xa000, scoped, tag = 'scratch operand']
  %s0 = inlined_call_operand.vmem [shape: f32[9,512], index: 0, kind: input, shape index: {}]
  %s1 = inlined_call_operand.vmem [shape: f32[2,4,256], index: 1, kind: input, shape index: {}]
  %s2 = inlined_call_operand.vmem [shape: bf16[4,36], index: 2, kind: input, shape index: {}]
  %s3 = inlined_call_operand.vmem [shape: f32[4,1], index: 3, kind: input, shape index: {}]
  %s4 = inlined_call_operand.vmem [shape: bf16[4,36], index: 4, kind: input, shape index: {}]
  %s5 = inlined_call_operand.vmem [shape: f32[4,1], index: 5, kind: input, shape index: {}]
  %s6 = inlined_call_operand.vmem [shape: f32[2,4,256], index: 6, kind: output, shape index: {}]
  %s7 = sld [smem:[#allocation0]]
  $region34: #{resunit_nobn_forward.1} parent=0
    _
  %s9 = ssub.s32 1, %s7
  %s10 = scalar_select 0, %s9, %s7
  // Predicated region
  $region2: #{resunit_nobn_forward.1} parent=0 // pred_check
    _
  $region3: #{resunit_nobn_forward.1} parent=0 // pred_check_branch
    %12 = sbr.rel (0) target = $region5
  $region4: #{resunit_nobn_forward.1} parent=0 // pred_region
    _
  $region5: #{resunit_nobn_forward.1} parent=0 // pred_fallthru
    _
  // Predicated region
  $region6: #{resunit_nobn_forward.1} parent=0 // pred_check
    _
  $region7: #{resunit_nobn_forward.1} parent=0 // pred_check_branch
    %14 = sbr.rel (0) target = $region9
  $region8: #{resunit_nobn_forward.1} parent=0 // pred_region
    _
  $region9: #{resunit_nobn_forward.1} parent=0 // pred_fallthru
    _
  // Predicated region
  $region10: #{resunit_nobn_forward.1} parent=0 // pred_check
    _
  $region11: #{resunit_nobn_forward.1} parent=0 // pred_check_branch
    %16 = sbr.rel (0) target = $region13
  $region12: #{resunit_nobn_forward.1} parent=0 // pred_region
    _
  $region13: #{resunit_nobn_forward.1} parent=0 // pred_fallthru
    _
  // Predicated region
  $region14: #{resunit_nobn_forward.1} parent=0 // pred_check
    _
  $region15: #{resunit_nobn_forward.1} parent=0 // pred_check_branch
    %18 = sbr.rel (0) target = $region17
  $region16: #{resunit_nobn_forward.1} parent=0 // pred_region
    _
  $region17: #{resunit_nobn_forward.1} parent=0 // pred_fallthru
    _
  // Predicated region
  $region18: #{resunit_nobn_forward.1} parent=0 // pred_check
    _
  $region19: #{resunit_nobn_forward.1} parent=0 // pred_check_branch
    %20 = sbr.rel (0) target = $region21
  $region20: #{resunit_nobn_forward.1} parent=0 // pred_region
    _
  $region21: #{resunit_nobn_forward.1} parent=0 // pred_fallthru
    _
  // Predicated region
  $region22: #{resunit_nobn_forward.1} parent=0 // pred_check
    _
  $region23: #{resunit_nobn_forward.1} parent=0 // pred_check_branch
    %22 = sbr.rel (0) target = $region25
  $region24: #{resunit_nobn_forward.1} parent=0 // pred_region
    _
  $region25: #{resunit_nobn_forward.1} parent=0 // pred_fallthru
    _
  %v24 = vld [vmem:[%s1] sm:$0xff]
  %s25 = scalar_lea.vmem %s1, 8
  %v26 = vld [vmem:[%s25] sm:$0xff]
  %v28 = vcombine.high %v24, %v24
  %v31 = vcombine.high %v26, %v26
  %v33 = vld [vmem:[%s0] ss:$8 sm:$0xf]
  %s34 = scalar_lea.vmem %s0, 1
  %v35 = vld [vmem:[%s34] ss:$8 sm:$0xf]
  %s36 = scalar_lea.vmem %s0, 2
  %v37 = vld [vmem:[%s36] ss:$8 sm:$0xf]
  %s38 = scalar_lea.vmem %s0, 3
  %v39 = vld [vmem:[%s38] ss:$8 sm:$0xf]
  %s40 = scalar_lea.vmem %s0, 4
  %v41 = vld [vmem:[%s40] ss:$8 sm:$0xf]
  %s42 = scalar_lea.vmem %s0, 5
  %v43 = vld [vmem:[%s42] ss:$8 sm:$0xf]
  %s44 = scalar_lea.vmem %s0, 6
  %v45 = vld [vmem:[%s44] ss:$8 sm:$0xf]
  %s46 = scalar_lea.vmem %s0, 7
  %v47 = vld [vmem:[%s46] ss:$8 sm:$0xf]
  %s48 = scalar_lea.vmem %s0, 32
  %v49 = vld [vmem:[%s48] ss:$8 sm:$0xf]
  %v50 = vmax.f32 %v24, 0.0
  %v51 = vmax.f32 %v28, 0.0
  %v52 = vmax.f32 %v26, 0.0
  %v53 = vmax.f32 %v31, 0.0
  %54 = vrot.lane.b32.xlu0 %v50, 17
  %v55 = vpop.permute.xlu0 %54
  %56 = vrot.lane.b32.xlu0 %v51, 17
  %v57 = vpop.permute.xlu0 %56
  %58 = vrot.lane.b32.xlu0 %v52, 17
  %v59 = vpop.permute.xlu0 %58
  %60 = vrot.lane.b32.xlu0 %v53, 17
  %v61 = vpop.permute.xlu0 %60
  %v62 = vlaneseq
  %v63 = vand.u32 %v62, 127
  %vm64 = vcmp.lt.s32.totalorder %v63, 17
  %v65 = vsel %vm64, %v59, %v61
  %v66 = vsel %vm64, %v57, %v59
  %v67 = vsel %vm64, %v55, %v57
  %v68 = vsel %vm64, %v61, %v55
  %v70 = vlaneseq
  %v71 = vshrl.u32 %v70, 7
  %v72 = vsub.s32 0, %v71
  %v73 = vrot.slane %v33, %v72
  %v74 = vlaneseq
  %v75 = vshrl.u32 %v74, 7
  %v76 = vsub.s32 1, %v75
  %v77 = vrot.slane %v33, %v76
  %v78 = vlaneseq
  %v79 = vshrl.u32 %v78, 7
  %v80 = vsub.s32 2, %v79
  %v81 = vrot.slane %v33, %v80
  %v82 = vlaneseq
  %v83 = vshrl.u32 %v82, 7
  %v84 = vsub.s32 3, %v83
  %v85 = vrot.slane %v33, %v84
  %v90 = vmul.f32 %v68, %v73
  %v91 = vmul.f32 %v67, %v77
  %v92 = vmul.f32 %v66, %v81
  %v93 = vmul.f32 %v65, %v85
  %v94 = vpack.c.bf16 %v90, %v90
  %v95 = vpack.c.bf16 %v91, %v91
  %v96 = vpack.c.bf16 %v92, %v92
  %v97 = vpack.c.bf16 %v93, %v93
  %v102 = vunpack.c.l.b16 %v94
  %v103 = vunpack.c.l.b16 %v95
  %v104 = vunpack.c.l.b16 %v96
  %v105 = vunpack.c.l.b16 %v97
  %v106 = vpack.c.b16 %v103, %v102
  %v107 = vpack.c.b16 %v105, %v104
  %110 = vst [vmem:[#allocation2] sm:$0x33] %v106
  %111 = vst [vmem:[#allocation2 + $0x8] sm:$0x33] %v107
  %112 = vrot.lane.b32.xlu0 %v50, 16
  %v113 = vpop.permute.xlu0 %112
  %114 = vrot.lane.b32.xlu0 %v51, 16
  %v115 = vpop.permute.xlu0 %114
  %116 = vrot.lane.b32.xlu0 %v52, 16
  %v117 = vpop.permute.xlu0 %116
  %118 = vrot.lane.b32.xlu0 %v53, 16
  %v119 = vpop.permute.xlu0 %118
  %vm120 = vcmp.lt.s32.totalorder %v63, 16
  %v121 = vsel %vm120, %v117, %v119
  %v122 = vsel %vm120, %v115, %v117
  %v123 = vsel %vm120, %v113, %v115
  %v124 = vsel %vm120, %v119, %v113
  %v126 = vlaneseq
  %v127 = vshrl.u32 %v126, 7
  %v128 = vsub.s32 0, %v127
  %v129 = vrot.slane %v35, %v128
  %v130 = vlaneseq
  %v131 = vshrl.u32 %v130, 7
  %v132 = vsub.s32 1, %v131
  %v133 = vrot.slane %v35, %v132
  %v134 = vlaneseq
  %v135 = vshrl.u32 %v134, 7
  %v136 = vsub.s32 2, %v135
  %v137 = vrot.slane %v35, %v136
  %v138 = vlaneseq
  %v139 = vshrl.u32 %v138, 7
  %v140 = vsub.s32 3, %v139
  %v141 = vrot.slane %v35, %v140
  %v146 = vmul.f32 %v124, %v129
  %v147 = vmul.f32 %v123, %v133
  %v148 = vmul.f32 %v122, %v137
  %v149 = vmul.f32 %v121, %v141
  %v150 = vpack.c.bf16 %v146, %v146
  %v151 = vpack.c.bf16 %v147, %v147
  %v152 = vpack.c.bf16 %v148, %v148
  %v153 = vpack.c.bf16 %v149, %v149
  %v158 = vunpack.c.l.b16 %v150
  %v159 = vunpack.c.l.b16 %v151
  %v160 = vunpack.c.l.b16 %v152
  %v161 = vunpack.c.l.b16 %v153
  %v162 = vpack.c.b16 %v159, %v158
  %v163 = vpack.c.b16 %v161, %v160
  %v164 = vrot.slane %v162, 6
  %v165 = vrot.slane %v163, 6
  %168 = vst [vmem:[#allocation2] sm:$0xcc] %v164
  %169 = vst [vmem:[#allocation2 + $0x8] sm:$0xcc] %v165
  %170 = vrot.lane.b32.xlu0 %v50, 15
  %v171 = vpop.permute.xlu0 %170
  %172 = vrot.lane.b32.xlu0 %v51, 15
  %v173 = vpop.permute.xlu0 %172
  %174 = vrot.lane.b32.xlu0 %v52, 15
  %v175 = vpop.permute.xlu0 %174
  %176 = vrot.lane.b32.xlu0 %v53, 15
  %v177 = vpop.permute.xlu0 %176
  %vm178 = vcmp.lt.s32.totalorder %v63, 15
  %v179 = vsel %vm178, %v175, %v177
  %v180 = vsel %vm178, %v173, %v175
  %v181 = vsel %vm178, %v171, %v173
  %v182 = vsel %vm178, %v177, %v171
  %v184 = vlaneseq
  %v185 = vshrl.u32 %v184, 7
  %v186 = vsub.s32 0, %v185
  %v187 = vrot.slane %v37, %v186
  %v188 = vlaneseq
  %v189 = vshrl.u32 %v188, 7
  %v190 = vsub.s32 1, %v189
  %v191 = vrot.slane %v37, %v190
  %v192 = vlaneseq
  %v193 = vshrl.u32 %v192, 7
  %v194 = vsub.s32 2, %v193
  %v195 = vrot.slane %v37, %v194
  %v196 = vlaneseq
  %v197 = vshrl.u32 %v196, 7
  %v198 = vsub.s32 3, %v197
  %v199 = vrot.slane %v37, %v198
  %v204 = vmul.f32 %v182, %v187
  %v205 = vmul.f32 %v181, %v191
  %v206 = vmul.f32 %v180, %v195
  %v207 = vmul.f32 %v179, %v199
  %v208 = vpack.c.bf16 %v204, %v204
  %v209 = vpack.c.bf16 %v205, %v205
  %v210 = vpack.c.bf16 %v206, %v206
  %v211 = vpack.c.bf16 %v207, %v207
  %v216 = vunpack.c.l.b16 %v208
  %v217 = vunpack.c.l.b16 %v209
  %v218 = vunpack.c.l.b16 %v210
  %v219 = vunpack.c.l.b16 %v211
  %v220 = vpack.c.b16 %v217, %v216
  %v221 = vpack.c.b16 %v219, %v218
  %224 = vst [vmem:[#allocation2 + $0x10] sm:$0x33] %v220
  %225 = vst [vmem:[#allocation2 + $0x18] sm:$0x33] %v221
  %226 = vrot.lane.b32.xlu0 %v50, 1
  %v227 = vpop.permute.xlu0 %226
  %228 = vrot.lane.b32.xlu0 %v51, 1
  %v229 = vpop.permute.xlu0 %228
  %230 = vrot.lane.b32.xlu0 %v52, 1
  %v231 = vpop.permute.xlu0 %230
  %232 = vrot.lane.b32.xlu0 %v53, 1
  %v233 = vpop.permute.xlu0 %232
  %vm234 = vcmp.lt.s32.totalorder %v63, 1
  %v235 = vsel %vm234, %v231, %v233
  %v236 = vsel %vm234, %v229, %v231
  %v237 = vsel %vm234, %v227, %v229
  %v238 = vsel %vm234, %v233, %v227
  %v240 = vlaneseq
  %v241 = vshrl.u32 %v240, 7
  %v242 = vsub.s32 0, %v241
  %v243 = vrot.slane %v39, %v242
  %v244 = vlaneseq
  %v245 = vshrl.u32 %v244, 7
  %v246 = vsub.s32 1, %v245
  %v247 = vrot.slane %v39, %v246
  %v248 = vlaneseq
  %v249 = vshrl.u32 %v248, 7
  %v250 = vsub.s32 2, %v249
  %v251 = vrot.slane %v39, %v250
  %v252 = vlaneseq
  %v253 = vshrl.u32 %v252, 7
  %v254 = vsub.s32 3, %v253
  %v255 = vrot.slane %v39, %v254
  %v260 = vmul.f32 %v238, %v243
  %v261 = vmul.f32 %v237, %v247
  %v262 = vmul.f32 %v236, %v251
  %v263 = vmul.f32 %v235, %v255
  %v264 = vpack.c.bf16 %v260, %v260
  %v265 = vpack.c.bf16 %v261, %v261
  %v266 = vpack.c.bf16 %v262, %v262
  %v267 = vpack.c.bf16 %v263, %v263
  %v272 = vunpack.c.l.b16 %v264
  %v273 = vunpack.c.l.b16 %v265
  %v274 = vunpack.c.l.b16 %v266
  %v275 = vunpack.c.l.b16 %v267
  %v276 = vpack.c.b16 %v273, %v272
  %v277 = vpack.c.b16 %v275, %v274
  %v278 = vrot.slane %v276, 6
  %v279 = vrot.slane %v277, 6
  %282 = vst [vmem:[#allocation2 + $0x10] sm:$0xcc] %v278
  %283 = vst [vmem:[#allocation2 + $0x18] sm:$0xcc] %v279
  %v285 = vlaneseq
  %v286 = vshrl.u32 %v285, 7
  %v287 = vsub.s32 0, %v286
  %v288 = vrot.slane %v41, %v287
  %v289 = vlaneseq
  %v290 = vshrl.u32 %v289, 7
  %v291 = vsub.s32 1, %v290
  %v292 = vrot.slane %v41, %v291
  %v293 = vlaneseq
  %v294 = vshrl.u32 %v293, 7
  %v295 = vsub.s32 2, %v294
  %v296 = vrot.slane %v41, %v295
  %v297 = vlaneseq
  %v298 = vshrl.u32 %v297, 7
  %v299 = vsub.s32 3, %v298
  %v300 = vrot.slane %v41, %v299
  %v305 = vmul.f32 %v50, %v288
  %v306 = vmul.f32 %v51, %v292
  %v307 = vmul.f32 %v52, %v296
  %v308 = vmul.f32 %v53, %v300
  %v309 = vpack.c.bf16 %v305, %v305
  %v310 = vpack.c.bf16 %v306, %v306
  %v311 = vpack.c.bf16 %v307, %v307
  %v312 = vpack.c.bf16 %v308, %v308
  %v317 = vunpack.c.l.b16 %v309
  %v318 = vunpack.c.l.b16 %v310
  %v319 = vunpack.c.l.b16 %v311
  %v320 = vunpack.c.l.b16 %v312
  %v321 = vpack.c.b16 %v318, %v317
  %v322 = vpack.c.b16 %v320, %v319
  %325 = vst [vmem:[#allocation2 + $0x20] sm:$0x33] %v321
  %326 = vst [vmem:[#allocation2 + $0x28] sm:$0x33] %v322
  %327 = vrot.lane.b32.xlu0 %v50, 127
  %v328 = vpop.permute.xlu0 %327
  %329 = vrot.lane.b32.xlu0 %v51, 127
  %v330 = vpop.permute.xlu0 %329
  %331 = vrot.lane.b32.xlu0 %v52, 127
  %v332 = vpop.permute.xlu0 %331
  %333 = vrot.lane.b32.xlu0 %v53, 127
  %v334 = vpop.permute.xlu0 %333
  %vm335 = vcmp.lt.s32.totalorder %v63, 127
  %v336 = vsel %vm335, %v332, %v334
  %v337 = vsel %vm335, %v330, %v332
  %v338 = vsel %vm335, %v328, %v330
  %v339 = vsel %vm335, %v334, %v328
  %v341 = vlaneseq
  %v342 = vshrl.u32 %v341, 7
  %v343 = vsub.s32 0, %v342
  %v344 = vrot.slane %v43, %v343
  %v345 = vlaneseq
  %v346 = vshrl.u32 %v345, 7
  %v347 = vsub.s32 1, %v346
  %v348 = vrot.slane %v43, %v347
  %v349 = vlaneseq
  %v350 = vshrl.u32 %v349, 7
  %v351 = vsub.s32 2, %v350
  %v352 = vrot.slane %v43, %v351
  %v353 = vlaneseq
  %v354 = vshrl.u32 %v353, 7
  %v355 = vsub.s32 3, %v354
  %v356 = vrot.slane %v43, %v355
  %v361 = vmul.f32 %v338, %v344
  %v362 = vmul.f32 %v337, %v348
  %v363 = vmul.f32 %v336, %v352
  %v364 = vmul.f32 %v339, %v356
  %v365 = vpack.c.bf16 %v361, %v361
  %v366 = vpack.c.bf16 %v362, %v362
  %v367 = vpack.c.bf16 %v363, %v363
  %v368 = vpack.c.bf16 %v364, %v364
  %v373 = vunpack.c.l.b16 %v365
  %v374 = vunpack.c.l.b16 %v366
  %v375 = vunpack.c.l.b16 %v367
  %v376 = vunpack.c.l.b16 %v368
  %v377 = vpack.c.b16 %v374, %v373
  %v378 = vpack.c.b16 %v376, %v375
  %v379 = vrot.slane %v377, 6
  %v380 = vrot.slane %v378, 6
  %383 = vst [vmem:[#allocation2 + $0x20] sm:$0xcc] %v379
  %384 = vst [vmem:[#allocation2 + $0x28] sm:$0xcc] %v380
  %385 = vrot.lane.b32.xlu0 %v50, 113
  %v386 = vpop.permute.xlu0 %385
  %387 = vrot.lane.b32.xlu0 %v51, 113
  %v388 = vpop.permute.xlu0 %387
  %389 = vrot.lane.b32.xlu0 %v52, 113
  %v390 = vpop.permute.xlu0 %389
  %391 = vrot.lane.b32.xlu0 %v53, 113
  %v392 = vpop.permute.xlu0 %391
  %vm393 = vcmp.lt.s32.totalorder %v63, 113
  %v394 = vsel %vm393, %v390, %v392
  %v395 = vsel %vm393, %v388, %v390
  %v396 = vsel %vm393, %v386, %v388
  %v397 = vsel %vm393, %v392, %v386
  %v399 = vlaneseq
  %v400 = vshrl.u32 %v399, 7
  %v401 = vsub.s32 0, %v400
  %v402 = vrot.slane %v45, %v401
  %v403 = vlaneseq
  %v404 = vshrl.u32 %v403, 7
  %v405 = vsub.s32 1, %v404
  %v406 = vrot.slane %v45, %v405
  %v407 = vlaneseq
  %v408 = vshrl.u32 %v407, 7
  %v409 = vsub.s32 2, %v408
  %v410 = vrot.slane %v45, %v409
  %v411 = vlaneseq
  %v412 = vshrl.u32 %v411, 7
  %v413 = vsub.s32 3, %v412
  %v414 = vrot.slane %v45, %v413
  %v419 = vmul.f32 %v396, %v402
  %v420 = vmul.f32 %v395, %v406
  %v421 = vmul.f32 %v394, %v410
  %v422 = vmul.f32 %v397, %v414
  %v423 = vpack.c.bf16 %v419, %v419
  %v424 = vpack.c.bf16 %v420, %v420
  %v425 = vpack.c.bf16 %v421, %v421
  %v426 = vpack.c.bf16 %v422, %v422
  %v431 = vunpack.c.l.b16 %v423
  %v432 = vunpack.c.l.b16 %v424
  %v433 = vunpack.c.l.b16 %v425
  %v434 = vunpack.c.l.b16 %v426
  %v435 = vpack.c.b16 %v432, %v431
  %v436 = vpack.c.b16 %v434, %v433
  %439 = vst [vmem:[#allocation2 + $0x30] sm:$0x33] %v435
  %440 = vst [vmem:[#allocation2 + $0x38] sm:$0x33] %v436
  %441 = vrot.lane.b32.xlu0 %v50, 112
  %v442 = vpop.permute.xlu0 %441
  %443 = vrot.lane.b32.xlu0 %v51, 112
  %v444 = vpop.permute.xlu0 %443
  %445 = vrot.lane.b32.xlu0 %v52, 112
  %v446 = vpop.permute.xlu0 %445
  %447 = vrot.lane.b32.xlu0 %v53, 112
  %v448 = vpop.permute.xlu0 %447
  %vm449 = vcmp.lt.s32.totalorder %v63, 112
  %v450 = vsel %vm449, %v446, %v448
  %v451 = vsel %vm449, %v444, %v446
  %v452 = vsel %vm449, %v442, %v444
  %v453 = vsel %vm449, %v448, %v442
  %v455 = vlaneseq
  %v456 = vshrl.u32 %v455, 7
  %v457 = vsub.s32 0, %v456
  %v458 = vrot.slane %v47, %v457
  %v459 = vlaneseq
  %v460 = vshrl.u32 %v459, 7
  %v461 = vsub.s32 1, %v460
  %v462 = vrot.slane %v47, %v461
  %v463 = vlaneseq
  %v464 = vshrl.u32 %v463, 7
  %v465 = vsub.s32 2, %v464
  %v466 = vrot.slane %v47, %v465
  %v467 = vlaneseq
  %v468 = vshrl.u32 %v467, 7
  %v469 = vsub.s32 3, %v468
  %v470 = vrot.slane %v47, %v469
  %v475 = vmul.f32 %v452, %v458
  %v476 = vmul.f32 %v451, %v462
  %v477 = vmul.f32 %v450, %v466
  %v478 = vmul.f32 %v453, %v470
  %v479 = vpack.c.bf16 %v475, %v475
  %v480 = vpack.c.bf16 %v476, %v476
  %v481 = vpack.c.bf16 %v477, %v477
  %v482 = vpack.c.bf16 %v478, %v478
  %v487 = vunpack.c.l.b16 %v479
  %v488 = vunpack.c.l.b16 %v480
  %v489 = vunpack.c.l.b16 %v481
  %v490 = vunpack.c.l.b16 %v482
  %v491 = vpack.c.b16 %v488, %v487
  %v492 = vpack.c.b16 %v490, %v489
  %v493 = vrot.slane %v491, 6
  %v494 = vrot.slane %v492, 6
  %497 = vst [vmem:[#allocation2 + $0x30] sm:$0xcc] %v493
  %498 = vst [vmem:[#allocation2 + $0x38] sm:$0xcc] %v494
  %499 = vrot.lane.b32.xlu0 %v50, 111
  %v500 = vpop.permute.xlu0 %499
  %501 = vrot.lane.b32.xlu0 %v51, 111
  %v502 = vpop.permute.xlu0 %501
  %503 = vrot.lane.b32.xlu0 %v52, 111
  %v504 = vpop.permute.xlu0 %503
  %505 = vrot.lane.b32.xlu0 %v53, 111
  %v506 = vpop.permute.xlu0 %505
  %vm507 = vcmp.lt.s32.totalorder %v63, 111
  %v508 = vsel %vm507, %v504, %v506
  %v509 = vsel %vm507, %v502, %v504
  %v510 = vsel %vm507, %v500, %v502
  %v511 = vsel %vm507, %v506, %v500
  %v513 = vlaneseq
  %v514 = vshrl.u32 %v513, 7
  %v515 = vsub.s32 0, %v514
  %v516 = vrot.slane %v49, %v515
  %v517 = vlaneseq
  %v518 = vshrl.u32 %v517, 7
  %v519 = vsub.s32 1, %v518
  %v520 = vrot.slane %v49, %v519
  %v521 = vlaneseq
  %v522 = vshrl.u32 %v521, 7
  %v523 = vsub.s32 2, %v522
  %v524 = vrot.slane %v49, %v523
  %v525 = vlaneseq
  %v526 = vshrl.u32 %v525, 7
  %v527 = vsub.s32 3, %v526
  %v528 = vrot.slane %v49, %v527
  %v533 = vmul.f32 %v510, %v516
  %v534 = vmul.f32 %v509, %v520
  %v535 = vmul.f32 %v508, %v524
  %v536 = vmul.f32 %v511, %v528
  %v537 = vpack.c.bf16 %v533, %v533
  %v538 = vpack.c.bf16 %v534, %v534
  %v539 = vpack.c.bf16 %v535, %v535
  %v540 = vpack.c.bf16 %v536, %v536
  %v545 = vunpack.c.l.b16 %v537
  %v546 = vunpack.c.l.b16 %v538
  %v547 = vunpack.c.l.b16 %v539
  %v548 = vunpack.c.l.b16 %v540
  %v549 = vpack.c.b16 %v546, %v545
  %v550 = vpack.c.b16 %v548, %v547
  %553 = vst [vmem:[#allocation2 + $0x40] sm:$0x33] %v549
  %554 = vst [vmem:[#allocation2 + $0x48] sm:$0x33] %v550
  %v555 = vld [vmem:[%s2] sm:$0x3]
  %v556 = vld [vmem:[#allocation2] sm:$0xff]
  %v557 = vld [vmem:[#allocation2 + $0x8] sm:$0xff]
  %v558 = vld [vmem:[#allocation2 + $0x10] sm:$0xff]
  %v559 = vld [vmem:[#allocation2 + $0x18] sm:$0xff]
  %v560 = vld [vmem:[#allocation2 + $0x20] sm:$0xff]
  %v561 = vld [vmem:[#allocation2 + $0x28] sm:$0xff]
  %v562 = vld [vmem:[#allocation2 + $0x30] sm:$0xff]
  %v563 = vld [vmem:[#allocation2 + $0x38] sm:$0xff]
  %v564 = vld [vmem:[#allocation2 + $0x40] sm:$0x33]
  %v565 = vld [vmem:[#allocation2 + $0x48] sm:$0x33]
  %v566 = vld [vmem:[%s3] sm:$0xf]
  %568 = vset.pattern.permute.xlu0 0
  %569 = vperm.xlu0 %568, %v566
  %v570 = vpop.permute.xlu0 %569
  %v582 = vunpack.c.l.b16 %v556
  %v583 = vunpack.c.h.b16 %v556
  %v584 = vunpack.c.l.b16 %v557
  %v585 = vunpack.c.h.b16 %v557
  %v586 = vunpack.c.l.b16 %v558
  %v587 = vunpack.c.h.b16 %v558
  %v588 = vunpack.c.l.b16 %v559
  %v589 = vunpack.c.h.b16 %v559
  %v590 = vunpack.c.l.b16 %v560
  %v591 = vunpack.c.h.b16 %v560
  %v592 = vunpack.c.l.b16 %v561
  %v593 = vunpack.c.h.b16 %v561
  %v594 = vunpack.c.l.b16 %v562
  %v595 = vunpack.c.h.b16 %v562
  %v596 = vunpack.c.l.b16 %v563
  %v597 = vunpack.c.h.b16 %v563
  %v598 = vunpack.c.l.b16 %v564
  %v599 = vunpack.c.h.b16 %v564
  %v600 = vunpack.c.l.b16 %v565
  %v601 = vunpack.c.h.b16 %v565
  %v602 = vpack.c.b16 %v586, %v582
  %v603 = vpack.c.b16 %v587, %v583
  %v604 = vpack.c.b16 %v588, %v584
  %v605 = vpack.c.b16 %v589, %v585
  %v606 = vpack.c.b16 %v594, %v590
  %v607 = vpack.c.b16 %v595, %v591
  %v608 = vpack.c.b16 %v596, %v592
  %v609 = vpack.c.b16 %v597, %v593
  %v610 = vpack.c.b16 %v598, %v598
  %v611 = vpack.c.b16 %v599, %v599
  %v612 = vpack.c.b16 %v600, %v600
  %v613 = vpack.c.b16 %v601, %v601
  %vm622 = vcmask 293888
  %v624 = vsel %vm622, %v555, 0
  %vm626 = vcmask 1041408
  %v628 = vsel %vm626, %v610, 0
  %v631 = vsel %vm626, %v611, 0
  %v634 = vsel %vm626, %v612, 0
  %v637 = vsel %vm626, %v613, 0
  %639 = vmatprep.subr.bf16.mxu0 0
  %640 = vmatpush1.bf16.msra.mxu0 0
  %641 = vmatprep.subr.bf16.mxu0 0
  %642 = vmatpush1.bf16.msra.mxu0 0
  %643 = vmatprep.subr.bf16.mxu0 0
  %644 = vmatpush1.bf16.msra.mxu0 0
  %645 = vmatprep.subr.bf16.mxu0 0
  %646 = vmatpush1.bf16.msra.mxu0 0
  %647 = vmatprep.subr.bf16.mxu0 0
  %648 = vmatpush1.bf16.msra.mxu0 0
  %649 = vmatprep.subr.bf16.mxu0 %v631
  %650 = vmatpush1.bf16.msra.mxu0 %v628
  %651 = vmatprep.subr.bf16.mxu0 %v607
  %652 = vmatpush1.bf16.msra.mxu0 %v606
  %653 = vmatprep.subr.bf16.mxu0 %v603
  %654 = vmatpush1.bf16.msra.mxu0 %v602
  %655 = vmatprep.subr.bf16.mxu0 0
  %656 = vmatpush2.bf16.msra.mxu0 0
  %657 = vmatprep.subr.bf16.mxu0 0
  %658 = vmatpush2.bf16.msra.mxu0 0
  %659 = vmatprep.subr.bf16.mxu0 0
  %660 = vmatpush2.bf16.msra.mxu0 0
  %661 = vmatprep.subr.bf16.mxu0 0
  %662 = vmatpush2.bf16.msra.mxu0 0
  %663 = vmatprep.subr.bf16.mxu0 0
  %664 = vmatpush2.bf16.msra.mxu0 0
  %665 = vmatprep.subr.bf16.mxu0 0
  %666 = vmatpush2.bf16.msra.mxu0 0
  %667 = vmatprep.subr.bf16.mxu0 0
  %668 = vmatpush2.bf16.msra.mxu0 0
  %669 = vmatprep.subr.bf16.mxu0 0
  %670 = vmatpush2.bf16.msra.mxu0 0
  %671 = vmatprep.mubr.bf16.mxu0 0
  %672 = vmatmul.mubr.bf16.gmra.mxu0 %v624
  %v673 = vpop.f32.mrf.mxu0
  %v674 = vadd.f32 %v570, %v673
  %v675 = vpop.f32.mrf.mxu0
  %v676 = vadd.f32 %v570, %v675
  %v677 = vpop.f32.mrf.mxu0
  %v678 = vpop.f32.mrf.mxu0
  %679 = vdwg.mxu0
  %680 = vmatprep.subr.bf16.mxu0 0
  %681 = vmatpush1.bf16.msra.mxu0 0
  %682 = vmatprep.subr.bf16.mxu0 0
  %683 = vmatpush1.bf16.msra.mxu0 0
  %684 = vmatprep.subr.bf16.mxu0 0
  %685 = vmatpush1.bf16.msra.mxu0 0
  %686 = vmatprep.subr.bf16.mxu0 0
  %687 = vmatpush1.bf16.msra.mxu0 0
  %688 = vmatprep.subr.bf16.mxu0 0
  %689 = vmatpush1.bf16.msra.mxu0 0
  %690 = vmatprep.subr.bf16.mxu0 %v637
  %691 = vmatpush1.bf16.msra.mxu0 %v634
  %692 = vmatprep.subr.bf16.mxu0 %v609
  %693 = vmatpush1.bf16.msra.mxu0 %v608
  %694 = vmatprep.subr.bf16.mxu0 %v605
  %695 = vmatpush1.bf16.msra.mxu0 %v604
  %696 = vmatprep.subr.bf16.mxu0 0
  %697 = vmatpush2.bf16.msra.mxu0 0
  %698 = vmatprep.subr.bf16.mxu0 0
  %699 = vmatpush2.bf16.msra.mxu0 0
  %700 = vmatprep.subr.bf16.mxu0 0
  %701 = vmatpush2.bf16.msra.mxu0 0
  %702 = vmatprep.subr.bf16.mxu0 0
  %703 = vmatpush2.bf16.msra.mxu0 0
  %704 = vmatprep.subr.bf16.mxu0 0
  %705 = vmatpush2.bf16.msra.mxu0 0
  %706 = vmatprep.subr.bf16.mxu0 0
  %707 = vmatpush2.bf16.msra.mxu0 0
  %708 = vmatprep.subr.bf16.mxu0 0
  %709 = vmatpush2.bf16.msra.mxu0 0
  %710 = vmatprep.subr.bf16.mxu0 0
  %711 = vmatpush2.bf16.msra.mxu0 0
  %712 = vmatprep.mubr.bf16.mxu0 0
  %713 = vmatmul.mubr.bf16.gmra.mxu0 %v624
  %v714 = vpop.f32.mrf.mxu0
  %v715 = vadd.f32 %v570, %v714
  %v716 = vpop.f32.mrf.mxu0
  %v717 = vadd.f32 %v570, %v716
  %v718 = vpop.f32.mrf.mxu0
  %v719 = vpop.f32.mrf.mxu0
  %720 = vdwg.mxu0
  %v721 = vmax.f32 %v674, 0.0
  %v722 = vmax.f32 %v676, 0.0
  %v723 = vmax.f32 %v715, 0.0
  %v724 = vmax.f32 %v717, 0.0
  %725 = vrot.lane.b32.xlu0 %v721, 17
  %v726 = vpop.permute.xlu0 %725
  %727 = vrot.lane.b32.xlu0 %v722, 17
  %v728 = vpop.permute.xlu0 %727
  %729 = vrot.lane.b32.xlu0 %v723, 17
  %v730 = vpop.permute.xlu0 %729
  %731 = vrot.lane.b32.xlu0 %v724, 17
  %v732 = vpop.permute.xlu0 %731
  %v733 = vsel %vm64, %v730, %v732
  %v734 = vsel %vm64, %v728, %v730
  %v735 = vsel %vm64, %v726, %v728
  %v736 = vsel %vm64, %v732, %v726
  %v737 = vmul.f32 %v736, %v73
  %v738 = vmul.f32 %v735, %v77
  %v739 = vmul.f32 %v734, %v81
  %v740 = vmul.f32 %v733, %v85
  %v741 = vpack.c.bf16 %v737, %v737
  %v742 = vpack.c.bf16 %v738, %v738
  %v743 = vpack.c.bf16 %v739, %v739
  %v744 = vpack.c.bf16 %v740, %v740
  %v749 = vunpack.c.l.b16 %v741
  %v750 = vunpack.c.l.b16 %v742
  %v751 = vunpack.c.l.b16 %v743
  %v752 = vunpack.c.l.b16 %v744
  %v753 = vpack.c.b16 %v750, %v749
  %v754 = vpack.c.b16 %v752, %v751
  %757 = vst [vmem:[#allocation2] sm:$0x33] %v753
  %758 = vst [vmem:[#allocation2 + $0x8] sm:$0x33] %v754
  %759 = vrot.lane.b32.xlu0 %v721, 16
  %v760 = vpop.permute.xlu0 %759
  %761 = vrot.lane.b32.xlu0 %v722, 16
  %v762 = vpop.permute.xlu0 %761
  %763 = vrot.lane.b32.xlu0 %v723, 16
  %v764 = vpop.permute.xlu0 %763
  %765 = vrot.lane.b32.xlu0 %v724, 16
  %v766 = vpop.permute.xlu0 %765
  %v767 = vsel %vm120, %v764, %v766
  %v768 = vsel %vm120, %v762, %v764
  %v769 = vsel %vm120, %v760, %v762
  %v770 = vsel %vm120, %v766, %v760
  %v771 = vmul.f32 %v770, %v129
  %v772 = vmul.f32 %v769, %v133
  %v773 = vmul.f32 %v768, %v137
  %v774 = vmul.f32 %v767, %v141
  %v775 = vpack.c.bf16 %v771, %v771
  %v776 = vpack.c.bf16 %v772, %v772
  %v777 = vpack.c.bf16 %v773, %v773
  %v778 = vpack.c.bf16 %v774, %v774
  %v783 = vunpack.c.l.b16 %v775
  %v784 = vunpack.c.l.b16 %v776
  %v785 = vunpack.c.l.b16 %v777
  %v786 = vunpack.c.l.b16 %v778
  %v787 = vpack.c.b16 %v784, %v783
  %v788 = vpack.c.b16 %v786, %v785
  %v789 = vrot.slane %v787, 6
  %v790 = vrot.slane %v788, 6
  %793 = vst [vmem:[#allocation2] sm:$0xcc] %v789
  %794 = vst [vmem:[#allocation2 + $0x8] sm:$0xcc] %v790
  %795 = vrot.lane.b32.xlu0 %v721, 15
  %v796 = vpop.permute.xlu0 %795
  %797 = vrot.lane.b32.xlu0 %v722, 15
  %v798 = vpop.permute.xlu0 %797
  %799 = vrot.lane.b32.xlu0 %v723, 15
  %v800 = vpop.permute.xlu0 %799
  %801 = vrot.lane.b32.xlu0 %v724, 15
  %v802 = vpop.permute.xlu0 %801
  %v803 = vsel %vm178, %v800, %v802
  %v804 = vsel %vm178, %v798, %v800
  %v805 = vsel %vm178, %v796, %v798
  %v806 = vsel %vm178, %v802, %v796
  %v807 = vmul.f32 %v806, %v187
  %v808 = vmul.f32 %v805, %v191
  %v809 = vmul.f32 %v804, %v195
  %v810 = vmul.f32 %v803, %v199
  %v811 = vpack.c.bf16 %v807, %v807
  %v812 = vpack.c.bf16 %v808, %v808
  %v813 = vpack.c.bf16 %v809, %v809
  %v814 = vpack.c.bf16 %v810, %v810
  %v819 = vunpack.c.l.b16 %v811
  %v820 = vunpack.c.l.b16 %v812
  %v821 = vunpack.c.l.b16 %v813
  %v822 = vunpack.c.l.b16 %v814
  %v823 = vpack.c.b16 %v820, %v819
  %v824 = vpack.c.b16 %v822, %v821
  %827 = vst [vmem:[#allocation2 + $0x10] sm:$0x33] %v823
  %828 = vst [vmem:[#allocation2 + $0x18] sm:$0x33] %v824
  %829 = vrot.lane.b32.xlu0 %v721, 1
  %v830 = vpop.permute.xlu0 %829
  %831 = vrot.lane.b32.xlu0 %v722, 1
  %v832 = vpop.permute.xlu0 %831
  %833 = vrot.lane.b32.xlu0 %v723, 1
  %v834 = vpop.permute.xlu0 %833
  %835 = vrot.lane.b32.xlu0 %v724, 1
  %v836 = vpop.permute.xlu0 %835
  %v837 = vsel %vm234, %v834, %v836
  %v838 = vsel %vm234, %v832, %v834
  %v839 = vsel %vm234, %v830, %v832
  %v840 = vsel %vm234, %v836, %v830
  %v841 = vmul.f32 %v840, %v243
  %v842 = vmul.f32 %v839, %v247
  %v843 = vmul.f32 %v838, %v251
  %v844 = vmul.f32 %v837, %v255
  %v845 = vpack.c.bf16 %v841, %v841
  %v846 = vpack.c.bf16 %v842, %v842
  %v847 = vpack.c.bf16 %v843, %v843
  %v848 = vpack.c.bf16 %v844, %v844
  %v853 = vunpack.c.l.b16 %v845
  %v854 = vunpack.c.l.b16 %v846
  %v855 = vunpack.c.l.b16 %v847
  %v856 = vunpack.c.l.b16 %v848
  %v857 = vpack.c.b16 %v854, %v853
  %v858 = vpack.c.b16 %v856, %v855
  %v859 = vrot.slane %v857, 6
  %v860 = vrot.slane %v858, 6
  %863 = vst [vmem:[#allocation2 + $0x10] sm:$0xcc] %v859
  %864 = vst [vmem:[#allocation2 + $0x18] sm:$0xcc] %v860
  %v865 = vmul.f32 %v721, %v288
  %v866 = vmul.f32 %v722, %v292
  %v867 = vmul.f32 %v723, %v296
  %v868 = vmul.f32 %v724, %v300
  %v869 = vpack.c.bf16 %v865, %v865
  %v870 = vpack.c.bf16 %v866, %v866
  %v871 = vpack.c.bf16 %v867, %v867
  %v872 = vpack.c.bf16 %v868, %v868
  %v877 = vunpack.c.l.b16 %v869
  %v878 = vunpack.c.l.b16 %v870
  %v879 = vunpack.c.l.b16 %v871
  %v880 = vunpack.c.l.b16 %v872
  %v881 = vpack.c.b16 %v878, %v877
  %v882 = vpack.c.b16 %v880, %v879
  %885 = vst [vmem:[#allocation2 + $0x20] sm:$0x33] %v881
  %886 = vst [vmem:[#allocation2 + $0x28] sm:$0x33] %v882
  %887 = vrot.lane.b32.xlu0 %v721, 127
  %v888 = vpop.permute.xlu0 %887
  %889 = vrot.lane.b32.xlu0 %v722, 127
  %v890 = vpop.permute.xlu0 %889
  %891 = vrot.lane.b32.xlu0 %v723, 127
  %v892 = vpop.permute.xlu0 %891
  %893 = vrot.lane.b32.xlu0 %v724, 127
  %v894 = vpop.permute.xlu0 %893
  %v895 = vsel %vm335, %v892, %v894
  %v896 = vsel %vm335, %v890, %v892
  %v897 = vsel %vm335, %v888, %v890
  %v898 = vsel %vm335, %v894, %v888
  %v899 = vmul.f32 %v897, %v344
  %v900 = vmul.f32 %v896, %v348
  %v901 = vmul.f32 %v895, %v352
  %v902 = vmul.f32 %v898, %v356
  %v903 = vpack.c.bf16 %v899, %v899
  %v904 = vpack.c.bf16 %v900, %v900
  %v905 = vpack.c.bf16 %v901, %v901
  %v906 = vpack.c.bf16 %v902, %v902
  %v911 = vunpack.c.l.b16 %v903
  %v912 = vunpack.c.l.b16 %v904
  %v913 = vunpack.c.l.b16 %v905
  %v914 = vunpack.c.l.b16 %v906
  %v915 = vpack.c.b16 %v912, %v911
  %v916 = vpack.c.b16 %v914, %v913
  %v917 = vrot.slane %v915, 6
  %v918 = vrot.slane %v916, 6
  %921 = vst [vmem:[#allocation2 + $0x20] sm:$0xcc] %v917
  %922 = vst [vmem:[#allocation2 + $0x28] sm:$0xcc] %v918
  %923 = vrot.lane.b32.xlu0 %v721, 113
  %v924 = vpop.permute.xlu0 %923
  %925 = vrot.lane.b32.xlu0 %v722, 113
  %v926 = vpop.permute.xlu0 %925
  %927 = vrot.lane.b32.xlu0 %v723, 113
  %v928 = vpop.permute.xlu0 %927
  %929 = vrot.lane.b32.xlu0 %v724, 113
  %v930 = vpop.permute.xlu0 %929
  %v931 = vsel %vm393, %v928, %v930
  %v932 = vsel %vm393, %v926, %v928
  %v933 = vsel %vm393, %v924, %v926
  %v934 = vsel %vm393, %v930, %v924
  %v935 = vmul.f32 %v933, %v402
  %v936 = vmul.f32 %v932, %v406
  %v937 = vmul.f32 %v931, %v410
  %v938 = vmul.f32 %v934, %v414
  %v939 = vpack.c.bf16 %v935, %v935
  %v940 = vpack.c.bf16 %v936, %v936
  %v941 = vpack.c.bf16 %v937, %v937
  %v942 = vpack.c.bf16 %v938, %v938
  %v947 = vunpack.c.l.b16 %v939
  %v948 = vunpack.c.l.b16 %v940
  %v949 = vunpack.c.l.b16 %v941
  %v950 = vunpack.c.l.b16 %v942
  %v951 = vpack.c.b16 %v948, %v947
  %v952 = vpack.c.b16 %v950, %v949
  %955 = vst [vmem:[#allocation2 + $0x30] sm:$0x33] %v951
  %956 = vst [vmem:[#allocation2 + $0x38] sm:$0x33] %v952
  %957 = vrot.lane.b32.xlu0 %v721, 112
  %v958 = vpop.permute.xlu0 %957
  %959 = vrot.lane.b32.xlu0 %v722, 112
  %v960 = vpop.permute.xlu0 %959
  %961 = vrot.lane.b32.xlu0 %v723, 112
  %v962 = vpop.permute.xlu0 %961
  %963 = vrot.lane.b32.xlu0 %v724, 112
  %v964 = vpop.permute.xlu0 %963
  %v965 = vsel %vm449, %v962, %v964
  %v966 = vsel %vm449, %v960, %v962
  %v967 = vsel %vm449, %v958, %v960
  %v968 = vsel %vm449, %v964, %v958
  %v969 = vmul.f32 %v967, %v458
  %v970 = vmul.f32 %v966, %v462
  %v971 = vmul.f32 %v965, %v466
  %v972 = vmul.f32 %v968, %v470
  %v973 = vpack.c.bf16 %v969, %v969
  %v974 = vpack.c.bf16 %v970, %v970
  %v975 = vpack.c.bf16 %v971, %v971
  %v976 = vpack.c.bf16 %v972, %v972
  %v981 = vunpack.c.l.b16 %v973
  %v982 = vunpack.c.l.b16 %v974
  %v983 = vunpack.c.l.b16 %v975
  %v984 = vunpack.c.l.b16 %v976
  %v985 = vpack.c.b16 %v982, %v981
  %v986 = vpack.c.b16 %v984, %v983
  %v987 = vrot.slane %v985, 6
  %v988 = vrot.slane %v986, 6
  %991 = vst [vmem:[#allocation2 + $0x30] sm:$0xcc] %v987
  %992 = vst [vmem:[#allocation2 + $0x38] sm:$0xcc] %v988
  %993 = vrot.lane.b32.xlu0 %v721, 111
  %v994 = vpop.permute.xlu0 %993
  %995 = vrot.lane.b32.xlu0 %v722, 111
  %v996 = vpop.permute.xlu0 %995
  %997 = vrot.lane.b32.xlu0 %v723, 111
  %v998 = vpop.permute.xlu0 %997
  %999 = vrot.lane.b32.xlu0 %v724, 111
  %v1000 = vpop.permute.xlu0 %999
  %v1001 = vsel %vm507, %v998, %v1000
  %v1002 = vsel %vm507, %v996, %v998
  %v1003 = vsel %vm507, %v994, %v996
  %v1004 = vsel %vm507, %v1000, %v994
  %v1005 = vmul.f32 %v1003, %v516
  %v1006 = vmul.f32 %v1002, %v520
  %v1007 = vmul.f32 %v1001, %v524
  %v1008 = vmul.f32 %v1004, %v528
  %v1009 = vpack.c.bf16 %v1005, %v1005
  %v1010 = vpack.c.bf16 %v1006, %v1006
  %v1011 = vpack.c.bf16 %v1007, %v1007
  %v1012 = vpack.c.bf16 %v1008, %v1008
  %v1017 = vunpack.c.l.b16 %v1009
  %v1018 = vunpack.c.l.b16 %v1010
  %v1019 = vunpack.c.l.b16 %v1011
  %v1020 = vunpack.c.l.b16 %v1012
  %v1021 = vpack.c.b16 %v1018, %v1017
  %v1022 = vpack.c.b16 %v1020, %v1019
  %1025 = vst [vmem:[#allocation2 + $0x40] sm:$0x33] %v1021
  %1026 = vst [vmem:[#allocation2 + $0x48] sm:$0x33] %v1022
  %v1027 = vld [vmem:[%s4] sm:$0x3]
  %v1028 = vld [vmem:[#allocation2] sm:$0xff]
  %v1029 = vld [vmem:[#allocation2 + $0x8] sm:$0xff]
  %v1030 = vld [vmem:[#allocation2 + $0x10] sm:$0xff]
  %v1031 = vld [vmem:[#allocation2 + $0x18] sm:$0xff]
  %v1032 = vld [vmem:[#allocation2 + $0x20] sm:$0xff]
  %v1033 = vld [vmem:[#allocation2 + $0x28] sm:$0xff]
  %v1034 = vld [vmem:[#allocation2 + $0x30] sm:$0xff]
  %v1035 = vld [vmem:[#allocation2 + $0x38] sm:$0xff]
  %v1036 = vld [vmem:[#allocation2 + $0x40] sm:$0x33]
  %v1037 = vld [vmem:[#allocation2 + $0x48] sm:$0x33]
  %v1038 = vld [vmem:[%s5] sm:$0xf]
  %1040 = vset.pattern.permute.xlu0 0
  %1041 = vperm.xlu0 %1040, %v1038
  %v1042 = vpop.permute.xlu0 %1041
  %v1054 = vunpack.c.l.b16 %v1028
  %v1055 = vunpack.c.h.b16 %v1028
  %v1056 = vunpack.c.l.b16 %v1029
  %v1057 = vunpack.c.h.b16 %v1029
  %v1058 = vunpack.c.l.b16 %v1030
  %v1059 = vunpack.c.h.b16 %v1030
  %v1060 = vunpack.c.l.b16 %v1031
  %v1061 = vunpack.c.h.b16 %v1031
  %v1062 = vunpack.c.l.b16 %v1032
  %v1063 = vunpack.c.h.b16 %v1032
  %v1064 = vunpack.c.l.b16 %v1033
  %v1065 = vunpack.c.h.b16 %v1033
  %v1066 = vunpack.c.l.b16 %v1034
  %v1067 = vunpack.c.h.b16 %v1034
  %v1068 = vunpack.c.l.b16 %v1035
  %v1069 = vunpack.c.h.b16 %v1035
  %v1070 = vunpack.c.l.b16 %v1036
  %v1071 = vunpack.c.h.b16 %v1036
  %v1072 = vunpack.c.l.b16 %v1037
  %v1073 = vunpack.c.h.b16 %v1037
  %v1074 = vpack.c.b16 %v1058, %v1054
  %v1075 = vpack.c.b16 %v1059, %v1055
  %v1076 = vpack.c.b16 %v1060, %v1056
  %v1077 = vpack.c.b16 %v1061, %v1057
  %v1078 = vpack.c.b16 %v1066, %v1062
  %v1079 = vpack.c.b16 %v1067, %v1063
  %v1080 = vpack.c.b16 %v1068, %v1064
  %v1081 = vpack.c.b16 %v1069, %v1065
  %v1082 = vpack.c.b16 %v1070, %v1070
  %v1083 = vpack.c.b16 %v1071, %v1071
  %v1084 = vpack.c.b16 %v1072, %v1072
  %v1085 = vpack.c.b16 %v1073, %v1073
  %v1095 = vsel %vm622, %v1027, 0
  %v1098 = vsel %vm626, %v1082, 0
  %v1101 = vsel %vm626, %v1083, 0
  %v1104 = vsel %vm626, %v1084, 0
  %v1107 = vsel %vm626, %v1085, 0
  %1109 = vmatprep.subr.bf16.mxu0 0
  %1110 = vmatpush1.bf16.msra.mxu0 0
  %1111 = vmatprep.subr.bf16.mxu0 0
  %1112 = vmatpush1.bf16.msra.mxu0 0
  %1113 = vmatprep.subr.bf16.mxu0 0
  %1114 = vmatpush1.bf16.msra.mxu0 0
  %1115 = vmatprep.subr.bf16.mxu0 0
  %1116 = vmatpush1.bf16.msra.mxu0 0
  %1117 = vmatprep.subr.bf16.mxu0 0
  %1118 = vmatpush1.bf16.msra.mxu0 0
  %1119 = vmatprep.subr.bf16.mxu0 %v1101
  %1120 = vmatpush1.bf16.msra.mxu0 %v1098
  %1121 = vmatprep.subr.bf16.mxu0 %v1079
  %1122 = vmatpush1.bf16.msra.mxu0 %v1078
  %1123 = vmatprep.subr.bf16.mxu0 %v1075
  %1124 = vmatpush1.bf16.msra.mxu0 %v1074
  %1125 = vmatprep.subr.bf16.mxu0 0
  %1126 = vmatpush2.bf16.msra.mxu0 0
  %1127 = vmatprep.subr.bf16.mxu0 0
  %1128 = vmatpush2.bf16.msra.mxu0 0
  %1129 = vmatprep.subr.bf16.mxu0 0
  %1130 = vmatpush2.bf16.msra.mxu0 0
  %1131 = vmatprep.subr.bf16.mxu0 0
  %1132 = vmatpush2.bf16.msra.mxu0 0
  %1133 = vmatprep.subr.bf16.mxu0 0
  %1134 = vmatpush2.bf16.msra.mxu0 0
  %1135 = vmatprep.subr.bf16.mxu0 0
  %1136 = vmatpush2.bf16.msra.mxu0 0
  %1137 = vmatprep.subr.bf16.mxu0 0
  %1138 = vmatpush2.bf16.msra.mxu0 0
  %1139 = vmatprep.subr.bf16.mxu0 0
  %1140 = vmatpush2.bf16.msra.mxu0 0
  %1141 = vmatprep.mubr.bf16.mxu0 0
  %1142 = vmatmul.mubr.bf16.gmra.mxu0 %v1095
  %v1143 = vpop.f32.mrf.mxu0
  %v1144 = vadd.f32 %v1042, %v1143
  %v1145 = vpop.f32.mrf.mxu0
  %v1146 = vadd.f32 %v1042, %v1145
  %v1147 = vpop.f32.mrf.mxu0
  %v1148 = vpop.f32.mrf.mxu0
  %1149 = vdwg.mxu0
  %1150 = vmatprep.subr.bf16.mxu0 0
  %1151 = vmatpush1.bf16.msra.mxu0 0
  %1152 = vmatprep.subr.bf16.mxu0 0
  %1153 = vmatpush1.bf16.msra.mxu0 0
  %1154 = vmatprep.subr.bf16.mxu0 0
  %1155 = vmatpush1.bf16.msra.mxu0 0
  %1156 = vmatprep.subr.bf16.mxu0 0
  %1157 = vmatpush1.bf16.msra.mxu0 0
  %1158 = vmatprep.subr.bf16.mxu0 0
  %1159 = vmatpush1.bf16.msra.mxu0 0
  %1160 = vmatprep.subr.bf16.mxu0 %v1107
  %1161 = vmatpush1.bf16.msra.mxu0 %v1104
  %1162 = vmatprep.subr.bf16.mxu0 %v1081
  %1163 = vmatpush1.bf16.msra.mxu0 %v1080
  %1164 = vmatprep.subr.bf16.mxu0 %v1077
  %1165 = vmatpush1.bf16.msra.mxu0 %v1076
  %1166 = vmatprep.subr.bf16.mxu0 0
  %1167 = vmatpush2.bf16.msra.mxu0 0
  %1168 = vmatprep.subr.bf16.mxu0 0
  %1169 = vmatpush2.bf16.msra.mxu0 0
  %1170 = vmatprep.subr.bf16.mxu0 0
  %1171 = vmatpush2.bf16.msra.mxu0 0
  %1172 = vmatprep.subr.bf16.mxu0 0
  %1173 = vmatpush2.bf16.msra.mxu0 0
  %1174 = vmatprep.subr.bf16.mxu0 0
  %1175 = vmatpush2.bf16.msra.mxu0 0
  %1176 = vmatprep.subr.bf16.mxu0 0
  %1177 = vmatpush2.bf16.msra.mxu0 0
  %1178 = vmatprep.subr.bf16.mxu0 0
  %1179 = vmatpush2.bf16.msra.mxu0 0
  %1180 = vmatprep.subr.bf16.mxu0 0
  %1181 = vmatpush2.bf16.msra.mxu0 0
  %1182 = vmatprep.mubr.bf16.mxu0 0
  %1183 = vmatmul.mubr.bf16.gmra.mxu0 %v1095
  %v1184 = vpop.f32.mrf.mxu0
  %v1185 = vadd.f32 %v1042, %v1184
  %v1186 = vpop.f32.mrf.mxu0
  %v1187 = vadd.f32 %v1042, %v1186
  %v1188 = vpop.f32.mrf.mxu0
  %v1189 = vpop.f32.mrf.mxu0
  %1190 = vdwg.mxu0
  %v1191 = vadd.f32 %v1144, %v24
  %v1192 = vadd.f32 %v1146, %v28
  %v1193 = vadd.f32 %v1185, %v26
  %v1194 = vadd.f32 %v1187, %v31
  %v1197 = vcombine.low %v1191, %v1192
  %1199 = vst [vmem:[%s6] sm:$0xff] %v1197
  %v1202 = vcombine.low %v1193, %v1194
  %s1204 = scalar_lea.vmem %s6, 8
  %1205 = vst [vmem:[%s1204] sm:$0xff] %v1202
  // Predicated region
  $region26: #{resunit_nobn_forward.1} parent=0 // pred_check
    _
  $region27: #{resunit_nobn_forward.1} parent=0 // pred_check_branch
    %1207 = sbr.rel (0) target = $region29
  $region28: #{resunit_nobn_forward.1} parent=0 // pred_region
    _
  $region29: #{resunit_nobn_forward.1} parent=0 // pred_fallthru
    _
  // Predicated region
  $region30: #{resunit_nobn_forward.1} parent=0 // pred_check
    _
  $region31: #{resunit_nobn_forward.1} parent=0 // pred_check_branch
    %1209 = sbr.rel (0) target = $region33
  $region32: #{resunit_nobn_forward.1} parent=0 // pred_region
    _
  $region33: #{resunit_nobn_forward.1} parent=0 // pred_fallthru
    _

</llo_original>
